<compile_context>
chip_gen: v7x
topology: tpu7x:2x2x1
jax: 0.10.0
libtpu: 0.0.40
codegen_flags: <defaults>
</compile_context>

<pallas_src>
import functools

import jax
import jax.numpy as jnp
from jax.experimental import pallas as pl
from jax.experimental.pallas import tpu as pltpu


def _graphconv_kernel(x_ref, adj_ref, w_ref, b_ref, o_ref, *, K):
    """Single grid step, whole (batch-folded) problem.

    x_ref  : (N, bs*f_in)     bf16  batch-folded node features
    adj_ref: (N, N)           bf16
    w_ref  : (K, bs*f_in, P)  bf16  block-diagonal folded conv weights
                                    (self weight already merged into k=0)
    b_ref  : (1, P)           f32   folded (tiled + lane-padded) bias
    o_ref  : (N, P)           f32
    """
    mxu_dtype = x_ref.dtype
    X = x_ref[...]                       # (N, Wi) bf16
    A = adj_ref[...]                     # (N, N)  bf16

    # k = 0 : T0 = X  (self-feature branch is folded into w_ref[0]).
    acc = jnp.dot(X, w_ref[0], preferred_element_type=jnp.float32)      # (N, P) f32

    if K > 1:
        t_prev = X.astype(jnp.float32)                                   # T0, f32
        t_cur = jnp.dot(A, X, preferred_element_type=jnp.float32)        # T1, f32
        acc = acc + jnp.dot(t_cur.astype(mxu_dtype), w_ref[1],
                            preferred_element_type=jnp.float32)
        for k in range(2, K):
            # Chebyshev recursion combined in f32; only MXU operands are bf16.
            t_next = 2.0 * jnp.dot(A, t_cur.astype(mxu_dtype),
                                   preferred_element_type=jnp.float32) - t_prev
            acc = acc + jnp.dot(t_next.astype(mxu_dtype), w_ref[k],
                                preferred_element_type=jnp.float32)
            t_prev, t_cur = t_cur, t_next

    acc = acc + b_ref[...]                                               # bias (f32)
    o_ref[...] = jnp.maximum(acc, 0.0).astype(o_ref.dtype)               # relu


def _round_up(v, m):
    return (v + m - 1) // m * m


def graph_conv(x, adj_mx, w_conv, w_self, b_self, *, K=3):
    """x: (bs, N, f_in); adj_mx: (N, N); w_conv: (K, f_in, F_out) (pre-transposed,
       split per k); w_self: (f_in, F_out); b_self: (1, F_out).
       Returns (bs, N, F_out)."""
    bs, N, f_in = x.shape
    F_out = w_conv.shape[-1]
    Wi = bs * f_in                       # folded input width (lanes of A-matmuls)
    P = _round_up(bs * F_out, 128)       # lane-dense (padded) folded output width
    mxu_dtype = jnp.bfloat16

    # ---- layout plumbing in XLA (one-off, cheap) --------------------------
    # Fold batch into the lane dim: X_folded[n, b*f_in + i] = x[b, n, i].
    x_fold = jnp.transpose(x, (1, 0, 2)).reshape(N, Wi).astype(mxu_dtype)
    adj = adj_mx.astype(mxu_dtype)

    # Batch-block-diagonal conv weights; merge self weight into k = 0 (T0 == x),
    # then pad the folded output width up to a multiple of 128.
    eye = jnp.eye(bs, dtype=w_conv.dtype)
    w_fold = jnp.einsum('bc,kio->kbico', eye, w_conv).reshape(K, Wi, bs * F_out)
    w_self_fold = jnp.einsum('bc,io->bico', eye, w_self).reshape(Wi, bs * F_out)
    w_fold = w_fold.at[0].add(w_self_fold)
    w_fold = jnp.pad(w_fold, ((0, 0), (0, 0), (0, P - bs * F_out))).astype(mxu_dtype)
    b_fold = jnp.pad(jnp.tile(b_self.reshape(1, F_out).astype(jnp.float32), (1, bs)),
                     ((0, 0), (0, P - bs * F_out)))

    # ---- resource hints ----------------------------------------------------
    in_bytes = (N * N + N * Wi + K * Wi * P) * 2 + P * 4         # bf16 operands + f32 bias
    out_bytes = N * P * 4
    scratch_bytes = 3 * N * Wi * 4 + N * P * 4                   # f32 T panels + accumulator
    vmem_limit = int(min(60 * 1024 * 1024,
                         max(16 * 1024 * 1024,
                             2 * (in_bytes + out_bytes) + scratch_bytes)))
    flops = 2 * (K - 1) * N * N * Wi + 2 * K * N * Wi * P
    cost = pl.CostEstimate(flops=flops, transcendentals=0,
                           bytes_accessed=in_bytes + out_bytes)

    kernel = functools.partial(_graphconv_kernel, K=K)

    out_fold = pl.pallas_call(
        kernel,
        out_shape=jax.ShapeDtypeStruct((N, P), jnp.float32),
        grid_spec=pltpu.PrefetchScalarGridSpec(
            num_scalar_prefetch=0,
            grid=(1,),
            in_specs=[
                pl.BlockSpec((N, Wi), lambda i: (0, 0)),         # x (batch-folded)
                pl.BlockSpec((N, N), lambda i: (0, 0)),          # adjacency
                pl.BlockSpec((K, Wi, P), lambda i: (0, 0, 0)),   # folded conv+self weights
                pl.BlockSpec((1, P), lambda i: (0, 0)),          # folded bias
            ],
            out_specs=pl.BlockSpec((N, P), lambda i: (0, 0)),
        ),
        compiler_params=pltpu.CompilerParams(
            dimension_semantics=("arbitrary",),
            vmem_limit_bytes=vmem_limit),
        cost_estimate=cost,
    )(x_fold, adj, w_fold, b_fold)

    # Unfold: (N, P) -> (bs, N, F_out), dropping the lane padding.
    out = out_fold[:, :bs * F_out].reshape(N, bs, F_out)
    return jnp.transpose(out, (1, 0, 2)).astype(x.dtype)


def graph_conv_ref(x, adj_mx, w_conv, w_self, b_self, *, K=3):
    """Pure-JAX f32 reference mirroring the PyTorch cheb_conv exactly."""
    h_list = [x, jnp.matmul(adj_mx, x)]
    for _ in range(2, K):
        h_list.append(2.0 * jnp.matmul(adj_mx, h_list[-1]) - h_list[-2])
    h = jnp.concatenate(h_list, axis=-1)                        # (bs, N, f_in*K)
    wc_flat = w_conv.reshape(K * x.shape[-1], -1)               # (f_in*K, F_out)
    out = jnp.matmul(h, wc_flat) + jnp.matmul(x, w_self) + b_self
    return jax.nn.relu(out)


if __name__ == "__main__":
    # Small shapes consistent with the module: bs=2, num_nodes=16, f_in=8, F_out=32, K=3.
    bs, N, f_in, F_out, K = 2, 16, 8, 32, 3

    key = jax.random.PRNGKey(0)
    kx, ka, kwc, kws, kb = jax.random.split(key, 5)

    x = jax.random.normal(kx, (bs, N, f_in), dtype=jnp.float32)
    adj = jax.random.normal(ka, (N, N), dtype=jnp.float32) / jnp.sqrt(N)

    # Deterministic parameter init (Linear-like scale); stored pre-transposed (in, out).
    w_conv = jax.random.uniform(kwc, (K, f_in, F_out), jnp.float32,
                                -1.0 / (f_in * K) ** 0.5, 1.0 / (f_in * K) ** 0.5)
    w_self = jax.random.uniform(kws, (f_in, F_out), jnp.float32,
                                -1.0 / f_in ** 0.5, 1.0 / f_in ** 0.5)
    b_self = jax.random.uniform(kb, (1, F_out), jnp.float32,
                                -1.0 / f_in ** 0.5, 1.0 / f_in ** 0.5)

    out = graph_conv(x, adj, w_conv, w_self, b_self, K=K)
    out = jax.block_until_ready(out)

    ref = graph_conv_ref(x, adj, w_conv, w_self, b_self, K=K)
    assert out.shape == (bs, N, F_out)
    # bf16 MXU operands with f32 accumulation -> compare at bf16-level tolerance.
    assert jnp.allclose(out, ref, atol=5e-2, rtol=5e-2), "mismatch vs reference"

    print("KERNEL_OK")
</pallas_src>

<mosaic_0001>
module attributes {stable_mosaic.version = 11 : i64} {
  func.func @_graphconv_kernel(%arg0: i32, %arg1: memref<16x16xbf16, #tpu.memory_space<vmem>>, %arg2: memref<16x16xbf16, #tpu.memory_space<vmem>>, %arg3: memref<3x16x128xbf16, #tpu.memory_space<vmem>>, %arg4: memref<1x128xf32, #tpu.memory_space<vmem>>, %arg5: memref<16x128xf32, #tpu.memory_space<vmem>>) attributes {dimension_semantics = [#tpu.dimension_semantics<arbitrary>], iteration_bounds = array<i64: 1>, scalar_prefetch = 0 : i64, scratch_operands = 0 : i64, tpu.core_type = #tpu.core_type<tc>, window_params = [{pipeline_mode = #tpu.pipeline_mode<synchronous>, transform_indices = @transform_0, window_bounds = array<i64: 16, 16>}, {pipeline_mode = #tpu.pipeline_mode<synchronous>, transform_indices = @transform_1, window_bounds = array<i64: 16, 16>}, {pipeline_mode = #tpu.pipeline_mode<synchronous>, transform_indices = @transform_2, window_bounds = array<i64: 3, 16, 128>}, {pipeline_mode = #tpu.pipeline_mode<synchronous>, transform_indices = @transform_3, window_bounds = array<i64: 1, 128>}, {pipeline_mode = #tpu.pipeline_mode<synchronous>, transform_indices = @transform_4, window_bounds = array<i64: 16, 128>}]} {
    %c0 = arith.constant 0 : index
    %c0_0 = arith.constant 0 : index
    %0 = vector.load %arg1[%c0, %c0_0] : memref<16x16xbf16, #tpu.memory_space<vmem>>, vector<16x16xbf16>
    %c0_1 = arith.constant 0 : index
    %c0_2 = arith.constant 0 : index
    %1 = vector.load %arg2[%c0_1, %c0_2] : memref<16x16xbf16, #tpu.memory_space<vmem>>, vector<16x16xbf16>
    %c0_3 = arith.constant 0 : index
    %c0_4 = arith.constant 0 : index
    %c0_5 = arith.constant 0 : index
    %2 = vector.load %arg3[%c0_3, %c0_4, %c0_5] : memref<3x16x128xbf16, #tpu.memory_space<vmem>>, vector<1x16x128xbf16>
    %3 = vector.shape_cast %2 : vector<1x16x128xbf16> to vector<16x128xbf16>
    %cst = arith.constant dense<0.000000e+00> : vector<16x128xf32>
    %4 = tpu.matmul %0, %3, %cst {dimension_numbers = #tpu.dot_dimension_numbers<[1], [0], [0], [1], [0, 0, 1, 1], [], []>} : vector<16x16xbf16>, vector<16x128xbf16>, vector<16x128xf32> -> vector<16x128xf32>
    %5 = arith.extf %0 : vector<16x16xbf16> to vector<16x16xf32>
    %cst_6 = arith.constant dense<0.000000e+00> : vector<16x16xf32>
    %6 = tpu.matmul %1, %0, %cst_6 {dimension_numbers = #tpu.dot_dimension_numbers<[1], [0], [0], [1], [0, 0, 1, 1], [], []>} : vector<16x16xbf16>, vector<16x16xbf16>, vector<16x16xf32> -> vector<16x16xf32>
    %7 = arith.truncf %6 : vector<16x16xf32> to vector<16x16xbf16>
    %c1 = arith.constant 1 : index
    %c0_7 = arith.constant 0 : index
    %c0_8 = arith.constant 0 : index
    %8 = vector.load %arg3[%c1, %c0_7, %c0_8] : memref<3x16x128xbf16, #tpu.memory_space<vmem>>, vector<1x16x128xbf16>
    %9 = vector.shape_cast %8 : vector<1x16x128xbf16> to vector<16x128xbf16>
    %cst_9 = arith.constant dense<0.000000e+00> : vector<16x128xf32>
    %10 = tpu.matmul %7, %9, %cst_9 {dimension_numbers = #tpu.dot_dimension_numbers<[1], [0], [0], [1], [0, 0, 1, 1], [], []>} : vector<16x16xbf16>, vector<16x128xbf16>, vector<16x128xf32> -> vector<16x128xf32>
    %11 = arith.addf %4, %10 : vector<16x128xf32>
    %12 = arith.truncf %6 : vector<16x16xf32> to vector<16x16xbf16>
    %cst_10 = arith.constant dense<0.000000e+00> : vector<16x16xf32>
    %13 = tpu.matmul %1, %12, %cst_10 {dimension_numbers = #tpu.dot_dimension_numbers<[1], [0], [0], [1], [0, 0, 1, 1], [], []>} : vector<16x16xbf16>, vector<16x16xbf16>, vector<16x16xf32> -> vector<16x16xf32>
    %cst_11 = arith.constant 2.000000e+00 : f32
    %14 = vector.broadcast %cst_11 : f32 to vector<16x16xf32>
    %15 = arith.mulf %14, %13 : vector<16x16xf32>
    %16 = arith.subf %15, %5 : vector<16x16xf32>
    %17 = arith.truncf %16 : vector<16x16xf32> to vector<16x16xbf16>
    %c2 = arith.constant 2 : index
    %c0_12 = arith.constant 0 : index
    %c0_13 = arith.constant 0 : index
    %18 = vector.load %arg3[%c2, %c0_12, %c0_13] : memref<3x16x128xbf16, #tpu.memory_space<vmem>>, vector<1x16x128xbf16>
    %19 = vector.shape_cast %18 : vector<1x16x128xbf16> to vector<16x128xbf16>
    %cst_14 = arith.constant dense<0.000000e+00> : vector<16x128xf32>
    %20 = tpu.matmul %17, %19, %cst_14 {dimension_numbers = #tpu.dot_dimension_numbers<[1], [0], [0], [1], [0, 0, 1, 1], [], []>} : vector<16x16xbf16>, vector<16x128xbf16>, vector<16x128xf32> -> vector<16x128xf32>
    %21 = arith.addf %11, %20 : vector<16x128xf32>
    %c0_15 = arith.constant 0 : index
    %c0_16 = arith.constant 0 : index
    %22 = vector.load %arg4[%c0_15, %c0_16] : memref<1x128xf32, #tpu.memory_space<vmem>>, vector<1x128xf32>
    %23 = vector.broadcast %22 : vector<1x128xf32> to vector<16x128xf32>
    %24 = arith.addf %21, %23 : vector<16x128xf32>
    %cst_17 = arith.constant 0.000000e+00 : f32
    %25 = vector.broadcast %cst_17 : f32 to vector<16x128xf32>
    %26 = arith.maximumf %24, %25 : vector<16x128xf32>
    %c0_18 = arith.constant 0 : index
    %c0_19 = arith.constant 0 : index
    %27 = vector.load %arg5[%c0_18, %c0_19] : memref<16x128xf32, #tpu.memory_space<vmem>>, vector<16x128xf32>
    tpu.vector_store %arg5[%c0_18, %c0_19], %26 {strides = array<i32>} : memref<16x128xf32, #tpu.memory_space<vmem>>, vector<16x128xf32>,
    return
  }
  func.func @transform_0(%arg0: i32) -> (i32, i32) {
    %c0_i32 = arith.constant 0 : i32
    %c0_i32_0 = arith.constant 0 : i32
    %c0_i32_1 = arith.constant 0 : i32
    return %c0_i32, %c0_i32_0 : i32, i32
  }
  func.func @transform_1(%arg0: i32) -> (i32, i32) {
    %c0_i32 = arith.constant 0 : i32
    %c0_i32_0 = arith.constant 0 : i32
    %c0_i32_1 = arith.constant 0 : i32
    return %c0_i32, %c0_i32_0 : i32, i32
  }
  func.func @transform_2(%arg0: i32) -> (i32, i32, i32) {
    %c0_i32 = arith.constant 0 : i32
    %c0_i32_0 = arith.constant 0 : i32
    %c0_i32_1 = arith.constant 0 : i32
    %c0_i32_2 = arith.constant 0 : i32
    return %c0_i32, %c0_i32_0, %c0_i32_1 : i32, i32, i32
  }
  func.func @transform_3(%arg0: i32) -> (i32, i32) {
    %c0_i32 = arith.constant 0 : i32
    %c0_i32_0 = arith.constant 0 : i32
    %c0_i32_1 = arith.constant 0 : i32
    return %c0_i32, %c0_i32_0 : i32, i32
  }
  func.func @transform_4(%arg0: i32) -> (i32, i32) {
    %c0_i32 = arith.constant 0 : i32
    %c0_i32_0 = arith.constant 0 : i32
    %c0_i32_1 = arith.constant 0 : i32
    return %c0_i32, %c0_i32_0 : i32, i32
  }
}

</mosaic_0001>

<llo_original>
// kernel: tpu_custom_call.1
$region0: #{tpu_custom_call.1}
  #allocation0 [shape = 'u32[]', space=smem, size = 0x4, offset = 0x4, fixed_abs, tag = 'smem constant byte address 0x4 - core index']
  #allocation1 [shape = 'u32[144,128]{1,0:T(1,128)}', space=vmem, size = 0x12000, scoped, tag = 'internal scratch']
  %s0 = inlined_call_operand.hbm [shape: bf16[16,16], index: 0, kind: input, shape index: {}]
  %s1 = inlined_call_operand.hbm [shape: bf16[16,16], index: 1, kind: input, shape index: {}]
  %s2 = inlined_call_operand.hbm [shape: bf16[3,16,128], index: 2, kind: input, shape index: {}]
  %s3 = inlined_call_operand.vmem [shape: f32[1,128], index: 3, kind: input, shape index: {}]
  %s4 = inlined_call_operand.hbm [shape: f32[16,128], index: 4, kind: output, shape index: {}]
  %s5 = sld [smem:[#allocation0]]
  $region38: #{tpu_custom_call.1} parent=0
    _
  %s7 = ssub.s32 1, %s5
  %s8 = scalar_select 0, %s7, %s5
  $region1: #{tpu_custom_call.1} parent=0
    #allocation2 [shape = 'u8[4096]{0}', space=vmem, size = 0x1000, scoped, tag = 'input window, operand 0, single buffered']
    #allocation3 [shape = 's32[1]{0}', space=sflag, size = 0x4, scoped, tag = 'scoped memory for tpu_custom_call.1']
    #allocation4 [shape = 's32[1]{0}', space=sflag, size = 0x4, scoped, tag = 'scoped memory for tpu_custom_call.1']
    #allocation5 [shape = 'u8[4096]{0}', space=vmem, size = 0x1000, scoped, tag = 'input window, operand 1, single buffered']
    #allocation6 [shape = 's32[1]{0}', space=sflag, size = 0x4, scoped, tag = 'scoped memory for tpu_custom_call.1']
    #allocation7 [shape = 'u8[12288]{0}', space=vmem, size = 0x3000, scoped, tag = 'input window, operand 2, single buffered']
    #allocation8 [shape = 'u8[8192]{0}', space=vmem, size = 0x2000, scoped, tag = 'output window, operand 0, single buffered']
    %9 = vsyncpa [#allocation3], 0
    %10 = vsyncpa [#allocation6], 0
    %11 = vsyncpa [#allocation4], 0
    // Predicated region
    $region2: #{tpu_custom_call.1} parent=1 // pred_check
      _
    $region3: #{tpu_custom_call.1} parent=1 // pred_check_branch
      %13 = sbr.rel (0) target = $region5
    $region4: #{tpu_custom_call.1} parent=1 // pred_region
      %s15 = ssub.s32 128, 128
      %16 = vsyncadd [#allocation3], %s15
      %s17 = sshll.u32 [#allocation2], 4
      %s18 = int_to_ptr.vmem [resolvable:$true] %s17
      %23 = dma.hbm_to_vmem [thread:$0]  %s0, 128, %s18, [#allocation3], 64, 64, 4
    $region5: #{tpu_custom_call.1} parent=1 // pred_fallthru
      _
    // Predicated region
    $region6: #{tpu_custom_call.1} parent=1 // pred_check
      _
    $region7: #{tpu_custom_call.1} parent=1 // pred_check_branch
      %25 = sbr.rel (0) target = $region9
    $region8: #{tpu_custom_call.1} parent=1 // pred_region
      %s27 = ssub.s32 128, 128
      %28 = vsyncadd [#allocation6], %s27
      %s29 = sshll.u32 [#allocation5], 4
      %s30 = int_to_ptr.vmem [resolvable:$true] %s29
      %35 = dma.hbm_to_vmem [thread:$0]  %s1, 128, %s30, [#allocation6], 64, 64, 4
    $region9: #{tpu_custom_call.1} parent=1 // pred_fallthru
      _
    // Predicated region
    $region10: #{tpu_custom_call.1} parent=1 // pred_check
      _
    $region11: #{tpu_custom_call.1} parent=1 // pred_check_branch
      %37 = sbr.rel (0) target = $region13
    $region12: #{tpu_custom_call.1} parent=1 // pred_region
      %s39 = ssub.s32 384, 384
      %40 = vsyncadd [#allocation6], %s39
      %s41 = sshll.u32 [#allocation7], 4
      %s42 = int_to_ptr.vmem [resolvable:$true] %s41
      %47 = dma.hbm_to_vmem [thread:$0]  %s2, 384, %s42, [#allocation6], 64, 64, 4
    $region13: #{tpu_custom_call.1} parent=1 // pred_fallthru
      _
    // Predicated region
    $region14: #{tpu_custom_call.1} parent=1 // pred_check
      _
    $region15: #{tpu_custom_call.1} parent=1 // pred_check_branch
      %49 = sbr.rel (0) target = $region17
    $region16: #{tpu_custom_call.1} parent=1 // pred_region
      _
    $region17: #{tpu_custom_call.1} parent=1 // pred_fallthru
      _
    // Predicated region
    $region18: #{tpu_custom_call.1} parent=1 // pred_check
      _
    $region19: #{tpu_custom_call.1} parent=1 // pred_check_branch
      %51 = sbr.rel (0) target = $region21
    $region20: #{tpu_custom_call.1} parent=1 // pred_region
      %52 = dma.done [#allocation3], 128
    $region21: #{tpu_custom_call.1} parent=1 // pred_fallthru
      _
    // Predicated region
    $region22: #{tpu_custom_call.1} parent=1 // pred_check
      _
    $region23: #{tpu_custom_call.1} parent=1 // pred_check_branch
      %54 = sbr.rel (0) target = $region25
    $region24: #{tpu_custom_call.1} parent=1 // pred_region
      %55 = dma.done [#allocation6], 128
    $region25: #{tpu_custom_call.1} parent=1 // pred_fallthru
      _
    // Predicated region
    $region26: #{tpu_custom_call.1} parent=1 // pred_check
      _
    $region27: #{tpu_custom_call.1} parent=1 // pred_check_branch
      %57 = sbr.rel (0) target = $region29
    $region28: #{tpu_custom_call.1} parent=1 // pred_region
      %58 = dma.done [#allocation6], 384
    $region29: #{tpu_custom_call.1} parent=1 // pred_fallthru
      _
    %v60 = vld [vmem:[#allocation2] sm:$0xf]
    %v61 = vld [vmem:[#allocation2 + $0x4] sm:$0xf]
    %v62 = vld [vmem:[#allocation5] sm:$0xf]
    %v63 = vld [vmem:[#allocation5 + $0x4] sm:$0xf]
    %v64 = vld [vmem:[#allocation7] sm:$0xf]
    %v65 = vld [vmem:[#allocation7 + $0x4] sm:$0xf]
    %v66 = vunpack.c.l.bf16 %v60
    %v67 = vunpack.c.l.bf16 %v61
    %v70 = vunpack.c.l.b16 %v62
    %v71 = vunpack.c.l.b16 %v63
    %v72 = vpack.c.b16 %v71, %v70
    %v75 = vunpack.c.l.b16 %v60
    %v76 = vunpack.c.l.b16 %v61
    %v77 = vpack.c.b16 %v76, %v75
    %vm79 = vcmask 130048
    %v81 = vsel %vm79, %v72, 0
    %83 = vmatprep.subr.bf16.mxu0 0
    %84 = vmatpush1.bf16.msra.mxu0 %v77
    %85 = vmatprep.subr.bf16.mxu0 0
    %86 = vmatpush1.bf16.msra.mxu0 0
    %87 = vmatprep.subr.bf16.mxu0 0
    %88 = vmatpush1.bf16.msra.mxu0 0
    %89 = vmatprep.subr.bf16.mxu0 0
    %90 = vmatpush1.bf16.msra.mxu0 0
    %91 = vmatprep.subr.bf16.mxu0 0
    %92 = vmatpush1.bf16.msra.mxu0 0
    %93 = vmatprep.subr.bf16.mxu0 0
    %94 = vmatpush1.bf16.msra.mxu0 0
    %95 = vmatprep.subr.bf16.mxu0 0
    %96 = vmatpush1.bf16.msra.mxu0 0
    %97 = vmatprep.subr.bf16.mxu0 0
    %98 = vmatpush1.bf16.msra.mxu0 0
    %99 = vmatprep.subr.bf16.mxu0 0
    %100 = vmatpush1.bf16.msra.mxu0 0
    %101 = vmatprep.subr.bf16.mxu0 0
    %102 = vmatpush1.bf16.msra.mxu0 0
    %103 = vmatprep.subr.bf16.mxu0 0
    %104 = vmatpush1.bf16.msra.mxu0 0
    %105 = vmatprep.subr.bf16.mxu0 0
    %106 = vmatpush1.bf16.msra.mxu0 0
    %107 = vmatprep.subr.bf16.mxu0 0
    %108 = vmatpush1.bf16.msra.mxu0 0
    %109 = vmatprep.subr.bf16.mxu0 0
    %110 = vmatpush1.bf16.msra.mxu0 0
    %111 = vmatprep.subr.bf16.mxu0 0
    %112 = vmatpush1.bf16.msra.mxu0 0
    %113 = vmatprep.subr.bf16.mxu0 0
    %114 = vmatpush1.bf16.msra.mxu0 0
    %115 = vmatprep.mubr.bf16.mxu0 0
    %116 = vmatmul.mubr.bf16.gmra.mrb[0].mxu0 %v81
    %v117 = vpop.f32.mrb[0].mxu0
    %v118 = vadd.f32 0.0, %v117
    %v119 = vpop.f32.mrb[0].mxu0
    %v120 = vpop.f32.mrb[0].mxu0
    %v121 = vadd.f32 0.0, %v120
    %v122 = vpop.f32.mrb[0].mxu0
    %123 = vdwg.mxu0
    %v124 = vpack.c.bf16 %v121, %v118
    %s125 = scalar_lea.vmem [#allocation7], 8
    %v126 = vld [vmem:[%s125] sm:$0xf]
    %v127 = vld [vmem:[%s125 + $0x4] sm:$0xf]
    %v130 = vunpack.c.l.b16 %v126
    %v131 = vunpack.c.l.b16 %v127
    %v132 = vpack.c.b16 %v131, %v130
    %v135 = vsel %vm79, %v124, 0
    %137 = vmatprep.subr.bf16.mxu0 0
    %138 = vmatpush1.bf16.msra.mxu0 %v132
    %139 = vmatprep.subr.bf16.mxu0 0
    %140 = vmatpush1.bf16.msra.mxu0 0
    %141 = vmatprep.subr.bf16.mxu0 0
    %142 = vmatpush1.bf16.msra.mxu0 0
    %143 = vmatprep.subr.bf16.mxu0 0
    %144 = vmatpush1.bf16.msra.mxu0 0
    %145 = vmatprep.subr.bf16.mxu0 0
    %146 = vmatpush1.bf16.msra.mxu0 0
    %147 = vmatprep.subr.bf16.mxu0 0
    %148 = vmatpush1.bf16.msra.mxu0 0
    %149 = vmatprep.subr.bf16.mxu0 0
    %150 = vmatpush1.bf16.msra.mxu0 0
    %151 = vmatprep.subr.bf16.mxu0 0
    %152 = vmatpush1.bf16.msra.mxu0 0
    %153 = vmatprep.subr.bf16.mxu0 0
    %154 = vmatpush1.bf16.msra.mxu0 0
    %155 = vmatprep.subr.bf16.mxu0 0
    %156 = vmatpush1.bf16.msra.mxu0 0
    %157 = vmatprep.subr.bf16.mxu0 0
    %158 = vmatpush1.bf16.msra.mxu0 0
    %159 = vmatprep.subr.bf16.mxu0 0
    %160 = vmatpush1.bf16.msra.mxu0 0
    %161 = vmatprep.subr.bf16.mxu0 0
    %162 = vmatpush1.bf16.msra.mxu0 0
    %163 = vmatprep.subr.bf16.mxu0 0
    %164 = vmatpush1.bf16.msra.mxu0 0
    %165 = vmatprep.subr.bf16.mxu0 0
    %166 = vmatpush1.bf16.msra.mxu0 0
    %167 = vmatprep.subr.bf16.mxu0 0
    %168 = vmatpush1.bf16.msra.mxu0 0
    %169 = vmatprep.mubr.bf16.mxu0 0
    %170 = vmatmul.mubr.bf16.gmra.mrb[0].mxu0 %v135
    %v171 = vpop.f32.mrb[0].mxu0
    %v172 = vadd.f32 0.0, %v171
    %v173 = vpop.f32.mrb[0].mxu0
    %v174 = vpop.f32.mrb[0].mxu0
    %v175 = vadd.f32 0.0, %v174
    %v176 = vpop.f32.mrb[0].mxu0
    %177 = vdwg.mxu0
    %v180 = vunpack.c.l.b16 %v64
    %v181 = vunpack.c.l.b16 %v65
    %v182 = vpack.c.b16 %v181, %v180
    %v185 = vsel %vm79, %v77, 0
    %187 = vmatprep.subr.bf16.mxu0 0
    %188 = vmatpush1.bf16.msra.mxu0 %v182
    %189 = vmatprep.subr.bf16.mxu0 0
    %190 = vmatpush1.bf16.msra.mxu0 0
    %191 = vmatprep.subr.bf16.mxu0 0
    %192 = vmatpush1.bf16.msra.mxu0 0
    %193 = vmatprep.subr.bf16.mxu0 0
    %194 = vmatpush1.bf16.msra.mxu0 0
    %195 = vmatprep.subr.bf16.mxu0 0
    %196 = vmatpush1.bf16.msra.mxu0 0
    %197 = vmatprep.subr.bf16.mxu0 0
    %198 = vmatpush1.bf16.msra.mxu0 0
    %199 = vmatprep.subr.bf16.mxu0 0
    %200 = vmatpush1.bf16.msra.mxu0 0
    %201 = vmatprep.subr.bf16.mxu0 0
    %202 = vmatpush1.bf16.msra.mxu0 0
    %203 = vmatprep.subr.bf16.mxu0 0
    %204 = vmatpush1.bf16.msra.mxu0 0
    %205 = vmatprep.subr.bf16.mxu0 0
    %206 = vmatpush1.bf16.msra.mxu0 0
    %207 = vmatprep.subr.bf16.mxu0 0
    %208 = vmatpush1.bf16.msra.mxu0 0
    %209 = vmatprep.subr.bf16.mxu0 0
    %210 = vmatpush1.bf16.msra.mxu0 0
    %211 = vmatprep.subr.bf16.mxu0 0
    %212 = vmatpush1.bf16.msra.mxu0 0
    %213 = vmatprep.subr.bf16.mxu0 0
    %214 = vmatpush1.bf16.msra.mxu0 0
    %215 = vmatprep.subr.bf16.mxu0 0
    %216 = vmatpush1.bf16.msra.mxu0 0
    %217 = vmatprep.subr.bf16.mxu0 0
    %218 = vmatpush1.bf16.msra.mxu0 0
    %219 = vmatprep.mubr.bf16.mxu0 0
    %220 = vmatmul.mubr.bf16.gmra.mrb[0].mxu0 %v185
    %v221 = vpop.f32.mrb[0].mxu0
    %v222 = vadd.f32 %v172, %v221
    %v223 = vpop.f32.mrb[0].mxu0
    %v224 = vpop.f32.mrb[0].mxu0
    %v225 = vadd.f32 %v175, %v224
    %v226 = vpop.f32.mrb[0].mxu0
    %227 = vdwg.mxu0
    %228 = vmatprep.subr.bf16.mxu0 0
    %229 = vmatpush1.bf16.msra.mxu0 %v124
    %230 = vmatprep.subr.bf16.mxu0 0
    %231 = vmatpush1.bf16.msra.mxu0 0
    %232 = vmatprep.subr.bf16.mxu0 0
    %233 = vmatpush1.bf16.msra.mxu0 0
    %234 = vmatprep.subr.bf16.mxu0 0
    %235 = vmatpush1.bf16.msra.mxu0 0
    %236 = vmatprep.subr.bf16.mxu0 0
    %237 = vmatpush1.bf16.msra.mxu0 0
    %238 = vmatprep.subr.bf16.mxu0 0
    %239 = vmatpush1.bf16.msra.mxu0 0
    %240 = vmatprep.subr.bf16.mxu0 0
    %241 = vmatpush1.bf16.msra.mxu0 0
    %242 = vmatprep.subr.bf16.mxu0 0
    %243 = vmatpush1.bf16.msra.mxu0 0
    %244 = vmatprep.subr.bf16.mxu0 0
    %245 = vmatpush1.bf16.msra.mxu0 0
    %246 = vmatprep.subr.bf16.mxu0 0
    %247 = vmatpush1.bf16.msra.mxu0 0
    %248 = vmatprep.subr.bf16.mxu0 0
    %249 = vmatpush1.bf16.msra.mxu0 0
    %250 = vmatprep.subr.bf16.mxu0 0
    %251 = vmatpush1.bf16.msra.mxu0 0
    %252 = vmatprep.subr.bf16.mxu0 0
    %253 = vmatpush1.bf16.msra.mxu0 0
    %254 = vmatprep.subr.bf16.mxu0 0
    %255 = vmatpush1.bf16.msra.mxu0 0
    %256 = vmatprep.subr.bf16.mxu0 0
    %257 = vmatpush1.bf16.msra.mxu0 0
    %258 = vmatprep.subr.bf16.mxu0 0
    %259 = vmatpush1.bf16.msra.mxu0 0
    %260 = vmatprep.mubr.bf16.mxu0 0
    %261 = vmatmul.mubr.bf16.gmra.mrb[0].mxu0 %v81
    %v262 = vpop.f32.mrb[0].mxu0
    %v263 = vadd.f32 0.0, %v262
    %v264 = vpop.f32.mrb[0].mxu0
    %v265 = vpop.f32.mrb[0].mxu0
    %v266 = vadd.f32 0.0, %v265
    %v267 = vpop.f32.mrb[0].mxu0
    %268 = vdwg.mxu0
    %v269 = vmul.f32 %v263, 2.0
    %v270 = vmul.f32 %v266, 2.0
    %v271 = vsub.f32 %v269, %v66
    %v272 = vsub.f32 %v270, %v67
    %v273 = vpack.c.bf16 %v272, %v271
    %s274 = scalar_lea.vmem [#allocation7], 16
    %v275 = vld [vmem:[%s274] sm:$0xf]
    %v276 = vld [vmem:[%s274 + $0x4] sm:$0xf]
    %v279 = vunpack.c.l.b16 %v275
    %v280 = vunpack.c.l.b16 %v276
    %v281 = vpack.c.b16 %v280, %v279
    %v284 = vsel %vm79, %v273, 0
    %286 = vmatprep.subr.bf16.mxu0 0
    %287 = vmatpush1.bf16.msra.mxu0 %v281
    %288 = vmatprep.subr.bf16.mxu0 0
    %289 = vmatpush1.bf16.msra.mxu0 0
    %290 = vmatprep.subr.bf16.mxu0 0
    %291 = vmatpush1.bf16.msra.mxu0 0
    %292 = vmatprep.subr.bf16.mxu0 0
    %293 = vmatpush1.bf16.msra.mxu0 0
    %294 = vmatprep.subr.bf16.mxu0 0
    %295 = vmatpush1.bf16.msra.mxu0 0
    %296 = vmatprep.subr.bf16.mxu0 0
    %297 = vmatpush1.bf16.msra.mxu0 0
    %298 = vmatprep.subr.bf16.mxu0 0
    %299 = vmatpush1.bf16.msra.mxu0 0
    %300 = vmatprep.subr.bf16.mxu0 0
    %301 = vmatpush1.bf16.msra.mxu0 0
    %302 = vmatprep.subr.bf16.mxu0 0
    %303 = vmatpush1.bf16.msra.mxu0 0
    %304 = vmatprep.subr.bf16.mxu0 0
    %305 = vmatpush1.bf16.msra.mxu0 0
    %306 = vmatprep.subr.bf16.mxu0 0
    %307 = vmatpush1.bf16.msra.mxu0 0
    %308 = vmatprep.subr.bf16.mxu0 0
    %309 = vmatpush1.bf16.msra.mxu0 0
    %310 = vmatprep.subr.bf16.mxu0 0
    %311 = vmatpush1.bf16.msra.mxu0 0
    %312 = vmatprep.subr.bf16.mxu0 0
    %313 = vmatpush1.bf16.msra.mxu0 0
    %314 = vmatprep.subr.bf16.mxu0 0
    %315 = vmatpush1.bf16.msra.mxu0 0
    %316 = vmatprep.subr.bf16.mxu0 0
    %317 = vmatpush1.bf16.msra.mxu0 0
    %318 = vmatprep.mubr.bf16.mxu0 0
    %319 = vmatmul.mubr.bf16.gmra.mrb[0].mxu0 %v284
    %v320 = vpop.f32.mrb[0].mxu0
    %v321 = vadd.f32 0.0, %v320
    %v322 = vpop.f32.mrb[0].mxu0
    %v323 = vpop.f32.mrb[0].mxu0
    %v324 = vadd.f32 0.0, %v323
    %v325 = vpop.f32.mrb[0].mxu0
    %326 = vdwg.mxu0
    %v327 = vadd.f32 %v222, %v321
    %v328 = vadd.f32 %v225, %v324
    %v329 = vld [vmem:[%s3] sm:$0x1]
    %v331 = vlaneseq
    %v332 = vshrl.u32 %v331, 7
    %v333 = vsub.s32 0, %v332
    %v334 = vrot.slane %v329, %v333
    %v336 = vadd.f32 %v327, %v334
    %v337 = vadd.f32 %v328, %v334
    %v338 = vmax.f32 %v336, 0.0
    %v339 = vmax.f32 %v337, 0.0
    %340 = vst [vmem:[#allocation8] sm:$0xff] %v338
    %341 = vst [vmem:[#allocation8 + $0x8] sm:$0xff] %v339
    // Predicated region
    $region30: #{tpu_custom_call.1} parent=1 // pred_check
      _
    $region31: #{tpu_custom_call.1} parent=1 // pred_check_branch
      %343 = sbr.rel (0) target = $region33
    $region32: #{tpu_custom_call.1} parent=1 // pred_region
      %s345 = ssub.s32 256, 256
      %346 = vsyncadd [#allocation4], %s345
      %s347 = sshll.u32 [#allocation8], 4
      %s348 = int_to_ptr.vmem [resolvable:$true] %s347
      %353 = dma.vmem_to_hbm [thread:$0]  %s348, 256, %s4, [#allocation4], 128, 128, 8
    $region33: #{tpu_custom_call.1} parent=1 // pred_fallthru
      _
    // Predicated region
    $region34: #{tpu_custom_call.1} parent=1 // pred_check
      _
    $region35: #{tpu_custom_call.1} parent=1 // pred_check_branch
      %355 = sbr.rel (0) target = $region37
    $region36: #{tpu_custom_call.1} parent=1 // pred_region
      %356 = dma.done [#allocation4], 256
    $region37: #{tpu_custom_call.1} parent=1 // pred_fallthru
      _
    %357 = vsyncpa [#allocation3], 1
    %358 = vsyncpa [#allocation6], 1
    %359 = vsyncpa [#allocation4], 1

</llo_original>
